<compile_context>
chip_gen: v7x
topology: tpu7x:2x2x1
jax: 0.10.0
libtpu: 0.0.40
codegen_flags: <defaults>
</compile_context>

<pallas_src>
import functools

import jax
import jax.numpy as jnp
import numpy as np
from jax.experimental import pallas as pl
from jax.experimental.pallas import tpu as pltpu


def _round_up(x, m):
    return (x + m - 1) // m * m


# ---------------------------------------------------------------------------
# Pallas kernels: tiled, K-accumulated fused matmul
#   out = relu?( A @ W_folded + bias [ + residual ] )
# BN scale is folded into W outside the kernel; the fused 1x1 downsample lives
# inside A/W (extra K columns/rows), so the epilogue is just bias(+res)+ReLU.
# ---------------------------------------------------------------------------
def _mm_kernel_scratch(apply_relu, has_res, *refs):
    """f32 VMEM accumulator variant (used when out dtype != f32)."""
    if has_res:
        a_ref, w_ref, b_ref, r_ref, o_ref, acc_ref = refs
    else:
        a_ref, w_ref, b_ref, o_ref, acc_ref = refs
    k = pl.program_id(2)

    @pl.when(k == 0)
    def _():
        acc_ref[...] = jnp.zeros_like(acc_ref)

    acc_ref[...] += jnp.dot(a_ref[...], w_ref[...],
                            preferred_element_type=jnp.float32)

    @pl.when(k == pl.num_programs(2) - 1)
    def _():
        out = acc_ref[...] + b_ref[...]
        if has_res:
            out = out + r_ref[...].astype(jnp.float32)
        if apply_relu:
            out = jnp.maximum(out, 0.0)
        o_ref[...] = out.astype(o_ref.dtype)


def _mm_kernel_inplace(apply_relu, has_res, *refs):
    """Accumulate straight into the resident f32 output block (no scratch)."""
    if has_res:
        a_ref, w_ref, b_ref, r_ref, o_ref = refs
    else:
        a_ref, w_ref, b_ref, o_ref = refs
    k = pl.program_id(2)

    @pl.when(k == 0)
    def _():
        o_ref[...] = jnp.zeros_like(o_ref)

    o_ref[...] += jnp.dot(a_ref[...], w_ref[...],
                          preferred_element_type=jnp.float32)

    @pl.when(k == pl.num_programs(2) - 1)
    def _():
        out = o_ref[...] + b_ref[...]
        if has_res:
            out = out + r_ref[...].astype(jnp.float32)
        if apply_relu:
            out = jnp.maximum(out, 0.0)
        o_ref[...] = out


def _choose_tiles(M, K, N):
    # Lane axis: 256-wide when channels allow (v6e/v7x MXU is 2x256x256),
    # 128 otherwise (also ideal for v5e's 4x128x128).
    Npad = _round_up(N, 128)
    tn = 256 if Npad % 256 == 0 else 128

    # K axis: pad to 128 first, then pick the largest 128-multiple divisor (<=1024).
    Kpad = _round_up(K, 128)
    tk = 128
    for cand in range(1024, 0, -128):
        if cand <= Kpad and Kpad % cand == 0:
            tk = cand
            break

    # M axis: big tiles for W reuse, but guarantee >= 2 parallel grid tiles overall
    # so both v7x TensorCores get work on small problems.
    M8 = _round_up(M, 8)
    tm = min(512, M8)
    Mpad = _round_up(M, tm)
    if (Npad // tn) * (Mpad // tm) < 2 and M8 >= 16:
        tm = _round_up(M8 // 2, 8)
        Mpad = _round_up(M, tm)
    return tm, tn, tk, Mpad, Npad, Kpad


def fused_conv_block(a, w, bias, *, residual=None, apply_relu=True,
                     out_dtype=jnp.float32, compute_dtype=jnp.bfloat16):
    """out = relu?( a @ w + bias (+ residual) )

    a: (M, K), w: (K, N) with BN scale (and any fused downsample rows) folded in,
    bias: (N,).  residual: (M, N) or None (added in f32 inside the kernel).
    """
    M, K = a.shape
    Kw, N = w.shape
    assert K == Kw

    tm, tn, tk, Mpad, Npad, Kpad = _choose_tiles(M, K, N)

    def pad2(x, rows, cols, dtype):
        x = x.astype(dtype)
        if x.shape != (rows, cols):
            x = jnp.pad(x, ((0, rows - x.shape[0]), (0, cols - x.shape[1])))
        return x

    a_p = pad2(a, Mpad, Kpad, compute_dtype)
    w_p = pad2(w, Kpad, Npad, compute_dtype)
    b_p = pad2(bias.reshape(1, N), 1, Npad, jnp.float32)

    inputs = [a_p, w_p, b_p]
    in_specs = [
        pl.BlockSpec((tm, tk), lambda i, j, k: (i, k)),
        pl.BlockSpec((tk, tn), lambda i, j, k: (k, j)),
        pl.BlockSpec((1, tn), lambda i, j, k: (0, j)),
    ]

    has_res = residual is not None
    if has_res:
        # bf16 residual: halves its HBM/VMEM bytes; the add happens in f32 in-kernel.
        inputs.append(pad2(residual, Mpad, Npad, compute_dtype))
        in_specs.append(pl.BlockSpec((tm, tn), lambda i, j, k: (i, j)))

    out_specs = pl.BlockSpec((tm, tn), lambda i, j, k: (i, j))

    use_scratch = jnp.dtype(out_dtype) != jnp.dtype(jnp.float32)
    if use_scratch:
        kernel = functools.partial(_mm_kernel_scratch, apply_relu, has_res)
        scratch = [pltpu.VMEM((tm, tn), jnp.float32)]
    else:
        kernel = functools.partial(_mm_kernel_inplace, apply_relu, has_res)
        scratch = []

    flops = 2 * Mpad * Kpad * Npad
    bytes_accessed = sum(int(np.prod(x.shape)) * x.dtype.itemsize for x in inputs)
    bytes_accessed += Mpad * Npad * jnp.dtype(out_dtype).itemsize

    # Double-buffered working set; raise the scoped-VMEM limit only if needed,
    # capped well inside v7x's 64 MiB physical VMEM.
    need = 2 * (tm * tk + tk * tn) * 2 + 2 * tn * 4
    need += 2 * tm * tn * jnp.dtype(out_dtype).itemsize
    if has_res:
        need += 2 * tm * tn * 2
    if use_scratch:
        need += tm * tn * 4
    cp_kwargs = dict(dimension_semantics=("parallel", "parallel", "arbitrary"))
    if need > (12 << 20):
        cp_kwargs["vmem_limit_bytes"] = int(min(2 * need, 48 << 20))

    out = pl.pallas_call(
        kernel,
        out_shape=jax.ShapeDtypeStruct((Mpad, Npad), out_dtype),
        grid_spec=pltpu.PrefetchScalarGridSpec(
            num_scalar_prefetch=0,
            grid=(Mpad // tm, Npad // tn, Kpad // tk),
            in_specs=in_specs,
            out_specs=out_specs,
            scratch_shapes=scratch,
        ),
        compiler_params=pltpu.CompilerParams(**cp_kwargs),
        cost_estimate=pl.CostEstimate(flops=flops, transcendentals=0,
                                      bytes_accessed=bytes_accessed),
    )(*inputs)

    if (Mpad, Npad) != (M, N):
        out = out[:M, :N]
    return out


# ---------------------------------------------------------------------------
# Glue: im2col patch extraction (NHWC), BN folding, weight reshaping
# ---------------------------------------------------------------------------
def extract_patches_nhwc(x, ksize, stride, dilation, padding, extra_cols=()):
    """x: (N, H, W, C) -> (N*Ho*Wo, ksize*ksize*C [+ extra]) patches, order (kh, kw, c).

    extra_cols: optional (N, Ho, Wo, C') arrays appended along the channel/K axis
    (used to fuse the 1x1 downsample columns into the same matmul).
    """
    N, H, W, C = x.shape
    Ho = (H + 2 * padding - dilation * (ksize - 1) - 1) // stride + 1
    Wo = (W + 2 * padding - dilation * (ksize - 1) - 1) // stride + 1
    xp = jnp.pad(x, ((0, 0), (padding, padding), (padding, padding), (0, 0)))
    cols = []
    for kh in range(ksize):
        for kw in range(ksize):
            h0 = kh * dilation
            w0 = kw * dilation
            cols.append(xp[:, h0:h0 + (Ho - 1) * stride + 1:stride,
                              w0:w0 + (Wo - 1) * stride + 1:stride, :])
    cols.extend(extra_cols)
    patches = jnp.concatenate(cols, axis=-1)        # (N, Ho, Wo, Ktot)
    Ktot = patches.shape[-1]
    return patches.reshape(N * Ho * Wo, Ktot), (N, Ho, Wo)


def fold_bn(gamma, beta, mean, var, eps=1e-5):
    scale = gamma / jnp.sqrt(var + eps)
    bias = beta - mean * scale
    return scale, bias


def conv_weight_to_matmul(w):
    """PyTorch OIHW (Cout, Cin, kh, kw) -> (kh*kw*Cin, Cout), matching patch ordering."""
    Cout, Cin, kh, kw = w.shape
    return jnp.transpose(w, (2, 3, 1, 0)).reshape(kh * kw * Cin, Cout)


# ---------------------------------------------------------------------------
# BasicBlock forward (inference-mode BN)
# ---------------------------------------------------------------------------
def basic_block_forward(x_nchw, params, stride, dilation=1,
                        compute_dtype=jnp.bfloat16):
    # NCHW -> NHWC, cast once to the MXU compute dtype BEFORE im2col so the 9x
    # patch buffer is materialized at half width.
    x = jnp.transpose(x_nchw, (0, 2, 3, 1)).astype(compute_dtype)
    N, H, W, Cin = x.shape
    Cout = params["w1"].shape[0]

    s1, b1 = fold_bn(*params["bn1"])
    s2, b2 = fold_bn(*params["bn2"])

    # Fold BN scale into the matmul weights (zero runtime cost).
    w1_mm = conv_weight_to_matmul(params["w1"]) * s1[None, :]
    w2_mm = conv_weight_to_matmul(params["w2"]) * s2[None, :]

    # conv1 (3x3, stride, padding=dilation, dilation) + BN1 + ReLU -- fused in Pallas
    p1, (_, Ho, Wo) = extract_patches_nhwc(x, 3, stride, dilation, dilation)
    out1 = fused_conv_block(p1, w1_mm, b1, apply_relu=True,
                            out_dtype=compute_dtype, compute_dtype=compute_dtype)
    out1_nhwc = out1.reshape(N, Ho, Wo, Cout)

    has_downsample = (stride != 1) or (Cin != Cout)
    if has_downsample:
        # Fuse the 1x1 downsample (stride s) + BN into conv2's K reduction:
        # append its strided-input columns to the im2col matrix and stack its
        # folded weight under conv2's weight -> one pipelined MXU reduction.
        sd, bd_bias = fold_bn(*params["bnd"])
        wd = params["wd"][:, :, 0, 0].T * sd[None, :]        # (Cin, Cout) folded
        xd = x[:, ::stride, ::stride, :][:, :Ho, :Wo, :]     # (N, Ho, Wo, Cin)
        p2, _ = extract_patches_nhwc(out1_nhwc, 3, 1, 1, 1, extra_cols=(xd,))
        w_cat = jnp.concatenate([w2_mm, wd], axis=0)         # (9*Cout + Cin, Cout)
        bias = b2 + bd_bias
        out2 = fused_conv_block(p2, w_cat, bias, apply_relu=True,
                                out_dtype=jnp.float32, compute_dtype=compute_dtype)
    else:
        # conv2 (3x3, stride 1, pad 1) + BN2 + identity residual + ReLU
        p2, _ = extract_patches_nhwc(out1_nhwc, 3, 1, 1, 1)
        identity = x.reshape(N * Ho * Wo, Cout)              # bf16 residual
        out2 = fused_conv_block(p2, w2_mm, b2, residual=identity, apply_relu=True,
                                out_dtype=jnp.float32, compute_dtype=compute_dtype)

    out = out2.reshape(N, Ho, Wo, Cout)
    return jnp.transpose(out, (0, 3, 1, 2))  # back to NCHW


# ---------------------------------------------------------------------------
# Pure-JAX reference (lax conv) for verification
# ---------------------------------------------------------------------------
def reference_forward(x, params, stride, dilation=1):
    def conv(x, w, s, pad, dil=1):
        return jax.lax.conv_general_dilated(
            x, w, (s, s), [(pad, pad), (pad, pad)], rhs_dilation=(dil, dil),
            dimension_numbers=("NCHW", "OIHW", "NCHW"))

    def bn(x, bn_params):
        g, b, m, v = bn_params
        s = g / jnp.sqrt(v + 1e-5)
        return x * s[None, :, None, None] + (b - m * s)[None, :, None, None]

    out = jax.nn.relu(bn(conv(x, params["w1"], stride, dilation, dilation), params["bn1"]))
    out = bn(conv(out, params["w2"], 1, 1), params["bn2"])
    Cin, Cout = params["w1"].shape[1], params["w1"].shape[0]
    if stride != 1 or Cin != Cout:
        identity = bn(conv(x, params["wd"], stride, 0), params["bnd"])
    else:
        identity = x
    return jax.nn.relu(out + identity)


# ---------------------------------------------------------------------------
def make_params(key, in_channels, out_channels, has_downsample):
    ks = jax.random.split(key, 8)

    def bn_params(k, c):
        k1, k2, k3, k4 = jax.random.split(k, 4)
        gamma = 1.0 + 0.1 * jax.random.normal(k1, (c,), jnp.float32)
        beta = 0.1 * jax.random.normal(k2, (c,), jnp.float32)
        mean = 0.1 * jax.random.normal(k3, (c,), jnp.float32)
        var = jnp.abs(jax.random.normal(k4, (c,), jnp.float32)) + 0.5
        return (gamma, beta, mean, var)

    params = {
        "w1": 0.1 * jax.random.normal(ks[0], (out_channels, in_channels, 3, 3), jnp.float32),
        "w2": 0.1 * jax.random.normal(ks[1], (out_channels, out_channels, 3, 3), jnp.float32),
        "bn1": bn_params(ks[2], out_channels),
        "bn2": bn_params(ks[3], out_channels),
    }
    if has_downsample:
        params["wd"] = 0.1 * jax.random.normal(ks[4], (out_channels, in_channels, 1, 1), jnp.float32)
        params["bnd"] = bn_params(ks[5], out_channels)
    return params


if __name__ == "__main__":
    key = jax.random.PRNGKey(0)
    k_x1, k_p1, k_x2, k_p2 = jax.random.split(key, 4)

    # Case 1: BasicBlock(in=4, out=8, stride=2) -> fused 1x1 downsample path.
    in_c, out_c, stride = 4, 8, 2
    x1 = jax.random.normal(k_x1, (2, in_c, 16, 16), jnp.float32)
    params1 = make_params(k_p1, in_c, out_c, has_downsample=True)
    out1 = jax.block_until_ready(basic_block_forward(x1, params1, stride))
    ref1 = jax.block_until_ready(reference_forward(x1, params1, stride))
    np.testing.assert_allclose(np.asarray(out1), np.asarray(ref1), rtol=5e-2, atol=5e-2)

    # Case 2: BasicBlock(in=8, out=8, stride=1) -> identity residual path.
    x2 = jax.random.normal(k_x2, (2, 8, 16, 16), jnp.float32)
    params2 = make_params(k_p2, 8, 8, has_downsample=False)
    out2 = jax.block_until_ready(basic_block_forward(x2, params2, 1))
    ref2 = jax.block_until_ready(reference_forward(x2, params2, 1))
    np.testing.assert_allclose(np.asarray(out2), np.asarray(ref2), rtol=5e-2, atol=5e-2)

    print("KERNEL_OK")
</pallas_src>

<mosaic_0001>
module attributes {stable_mosaic.version = 11 : i64} {
  func.func @_mm_kernel_scratch(%arg0: i32, %arg1: i32, %arg2: i32, %arg3: memref<64x128xbf16, #tpu.memory_space<vmem>>, %arg4: memref<128x128xbf16, #tpu.memory_space<vmem>>, %arg5: memref<1x128xf32, #tpu.memory_space<vmem>>, %arg6: memref<64x128xbf16, #tpu.memory_space<vmem>>, %arg7: memref<64x128xf32, #tpu.memory_space<vmem>>) attributes {dimension_semantics = [#tpu.dimension_semantics<parallel>, #tpu.dimension_semantics<parallel>, #tpu.dimension_semantics<arbitrary>], iteration_bounds = array<i64: 2, 1, 1>, scalar_prefetch = 0 : i64, scratch_operands = 1 : i64, tpu.core_type = #tpu.core_type<tc>, window_params = [{transform_indices = @transform_0, window_bounds = array<i64: 64, 128>}, {transform_indices = @transform_1, window_bounds = array<i64: 128, 128>}, {transform_indices = @transform_2, window_bounds = array<i64: 1, 128>}, {transform_indices = @transform_3, window_bounds = array<i64: 64, 128>}]} {
    %c0_i32 = arith.constant 0 : i32
    %0 = arith.cmpi eq, %arg2, %c0_i32 : i32
    %1 = arith.extui %0 : i1 to i32
    %c0_i32_0 = arith.constant 0 : i32
    %2 = arith.cmpi ne, %1, %c0_i32_0 : i32
    scf.if %2 {
      %cst_10 = arith.constant 0.000000e+00 : f32
      %12 = vector.broadcast %cst_10 : f32 to vector<64x128xf32>
      %c0_11 = arith.constant 0 : index
      %c0_12 = arith.constant 0 : index
      %13 = vector.load %arg7[%c0_11, %c0_12] : memref<64x128xf32, #tpu.memory_space<vmem>>, vector<64x128xf32>
      tpu.vector_store %arg7[%c0_11, %c0_12], %12 {strides = array<i32>} : memref<64x128xf32, #tpu.memory_space<vmem>>, vector<64x128xf32>,
    } else {
    }
    %c0 = arith.constant 0 : index
    %c0_1 = arith.constant 0 : index
    %3 = vector.load %arg7[%c0, %c0_1] : memref<64x128xf32, #tpu.memory_space<vmem>>, vector<64x128xf32>
    %c0_2 = arith.constant 0 : index
    %c0_3 = arith.constant 0 : index
    %4 = vector.load %arg3[%c0_2, %c0_3] : memref<64x128xbf16, #tpu.memory_space<vmem>>, vector<64x128xbf16>
    %c0_4 = arith.constant 0 : index
    %c0_5 = arith.constant 0 : index
    %5 = vector.load %arg4[%c0_4, %c0_5] : memref<128x128xbf16, #tpu.memory_space<vmem>>, vector<128x128xbf16>
    %cst = arith.constant dense<0.000000e+00> : vector<64x128xf32>
    %6 = tpu.matmul %4, %5, %cst {dimension_numbers = #tpu.dot_dimension_numbers<[1], [0], [0], [1], [0, 0, 1, 1], [], []>} : vector<64x128xbf16>, vector<128x128xbf16>, vector<64x128xf32> -> vector<64x128xf32>
    %7 = arith.addf %3, %6 : vector<64x128xf32>
    %c0_6 = arith.constant 0 : index
    %c0_7 = arith.constant 0 : index
    %8 = vector.load %arg7[%c0_6, %c0_7] : memref<64x128xf32, #tpu.memory_space<vmem>>, vector<64x128xf32>
    tpu.vector_store %arg7[%c0_6, %c0_7], %7 {strides = array<i32>} : memref<64x128xf32, #tpu.memory_space<vmem>>, vector<64x128xf32>,
    %c0_i32_8 = arith.constant 0 : i32
    %9 = arith.cmpi eq, %arg2, %c0_i32_8 : i32
    %10 = arith.extui %9 : i1 to i32
    %c0_i32_9 = arith.constant 0 : i32
    %11 = arith.cmpi ne, %10, %c0_i32_9 : i32
    scf.if %11 {
      %c0_10 = arith.constant 0 : index
      %c0_11 = arith.constant 0 : index
      %12 = vector.load %arg7[%c0_10, %c0_11] : memref<64x128xf32, #tpu.memory_space<vmem>>, vector<64x128xf32>
      %c0_12 = arith.constant 0 : index
      %c0_13 = arith.constant 0 : index
      %13 = vector.load %arg5[%c0_12, %c0_13] : memref<1x128xf32, #tpu.memory_space<vmem>>, vector<1x128xf32>
      %14 = vector.broadcast %13 : vector<1x128xf32> to vector<64x128xf32>
      %15 = arith.addf %12, %14 : vector<64x128xf32>
      %cst_14 = arith.constant 0.000000e+00 : f32
      %16 = vector.broadcast %cst_14 : f32 to vector<64x128xf32>
      %17 = arith.maximumf %15, %16 : vector<64x128xf32>
      %18 = arith.truncf %17 : vector<64x128xf32> to vector<64x128xbf16>
      %c0_15 = arith.constant 0 : index
      %c0_16 = arith.constant 0 : index
      %19 = vector.load %arg6[%c0_15, %c0_16] : memref<64x128xbf16, #tpu.memory_space<vmem>>, vector<64x128xbf16>
      tpu.vector_store %arg6[%c0_15, %c0_16], %18 {strides = array<i32>} : memref<64x128xbf16, #tpu.memory_space<vmem>>, vector<64x128xbf16>,
    } else {
    }
    return
  }
  func.func @transform_0(%arg0: i32, %arg1: i32, %arg2: i32) -> (i32, i32) {
    %c0_i32 = arith.constant 0 : i32
    return %arg0, %arg2 : i32, i32
  }
  func.func @transform_1(%arg0: i32, %arg1: i32, %arg2: i32) -> (i32, i32) {
    %c0_i32 = arith.constant 0 : i32
    return %arg2, %arg1 : i32, i32
  }
  func.func @transform_2(%arg0: i32, %arg1: i32, %arg2: i32) -> (i32, i32) {
    %c0_i32 = arith.constant 0 : i32
    %c0_i32_0 = arith.constant 0 : i32
    return %c0_i32, %arg1 : i32, i32
  }
  func.func @transform_3(%arg0: i32, %arg1: i32, %arg2: i32) -> (i32, i32) {
    %c0_i32 = arith.constant 0 : i32
    return %arg0, %arg1 : i32, i32
  }
}

</mosaic_0001>

<llo_original>
// kernel: tpu_custom_call.1
$region0: #{tpu_custom_call.1}
  #allocation0 [shape = 'u32[]', space=smem, size = 0x4, offset = 0x4, fixed_abs, tag = 'smem constant byte address 0x4 - core index']
  #allocation1 [shape = 'u32[144,128]{1,0:T(1,128)}', space=vmem, size = 0x12000, scoped, tag = 'internal scratch']
  #allocation2 [shape = 'f32[64,128]{1,0:T(8,128)}', space=vmem, size = 0x8000, scoped, tag = 'scratch operand']
  %s0 = inlined_call_operand.hbm [shape: bf16[128,128], index: 0, kind: input, shape index: {}]
  %s1 = inlined_call_operand.hbm [shape: bf16[128,128], index: 1, kind: input, shape index: {}]
  %s2 = inlined_call_operand.vmem [shape: f32[1,128], index: 2, kind: input, shape index: {}]
  %s3 = inlined_call_operand.hbm [shape: bf16[128,128], index: 3, kind: output, shape index: {}]
  %s4 = sld [smem:[#allocation0]]
  $region61: #{tpu_custom_call.1} parent=0
    _
  %s6 = ssub.s32 1, %s4
  %s7 = scalar_select 0, %s6, %s4
  $region1: #{tpu_custom_call.1} parent=0
    #allocation3 [shape = 'u8[32768]{0}', space=vmem, size = 0x8000, scoped, tag = 'input window, operand 0']
    #allocation4 [shape = 's32[2]{0}', space=sflag, size = 0x8, scoped, tag = 'scoped memory for tpu_custom_call.1']
    #allocation5 [shape = 's32[2]{0}', space=sflag, size = 0x8, scoped, tag = 'scoped memory for tpu_custom_call.1']
    #allocation6 [shape = 'u8[32768]{0}', space=vmem, size = 0x8000, scoped, tag = 'input window, operand 1, single buffered']
    #allocation7 [shape = 's32[1]{0}', space=sflag, size = 0x4, scoped, tag = 'scoped memory for tpu_custom_call.1']
    #allocation8 [shape = 'u8[32768]{0}', space=vmem, size = 0x8000, scoped, tag = 'output window, operand 0']
    %8 = vsyncpa [#allocation4], 0
    %s9 = scalar_lea.sflag [#allocation4], 1
    %10 = vsyncpa %s9, 0
    %11 = vsyncpa [#allocation7], 0
    %12 = vsyncpa [#allocation5], 0
    %s13 = scalar_lea.sflag [#allocation5], 1
    %14 = vsyncpa %s13, 0
    loop: start=0, step=1, limit=4
    $region2: #{tpu_custom_call.1} parent=1 // loop_pre_header
      _
    $region3: #{tpu_custom_call.1} parent=1 // loop_header
      %s16 = sphi 0, %s20
      %p17 = scmp.ge.s32.totalorder %s16, 4
      %s23 = sphi 0, %s42
      %s24 = sphi 0, %s38
      %s25 = sphi 0, %s34
      %s26 = sphi 0, %s23
      %s27 = sphi 0, %s24
      %s28 = sphi 0, %s25
      %s29 = sphi 0, %s26
      %s30 = sphi 0, %s27
      %s31 = sphi 0, %s28
      %s47 = sphi 0, %s49
      %s50 = sphi 0, %s47
      %s51 = sphi 0, %s50
      %s67 = sphi 0, %s51
      %s75 = sphi 0, %s77
      %s78 = sphi 0, %s75
      %s79 = sphi 0, %s78
      %s95 = sphi 0, %s79
      %s101 = sphi 0, %s103
      %s104 = sphi 0, %s101
      %s105 = sphi 0, %s104
      %s121 = sphi 0, %s105
      %s129 = sphi 0, %s131
      %s132 = sphi 0, %s129
      %s133 = sphi 0, %s132
      %s149 = sphi 0, %s133
    $region4: #{tpu_custom_call.1} parent=1 // loop_header_branch
      %19 = sbr.rel (%p17) target = $region8
    $region5: #{tpu_custom_call.1} parent=1 // loop_body
      %s21 = ssub.s32 %s16, 1
      %s22 = ssub.s32 %s16, 2
      %s32 = sadd.s32 1, %s25
      %p33 = scmp.ge.s32.totalorder %s32, 1
      %s34 = scalar_select %p33, 0, %s32
      %s35 = sadd.s32 1, %s24
      %s36 = scalar_select %p33, %s35, %s24
      %p37 = scmp.ge.s32.totalorder %s36, 1
      %s38 = scalar_select %p37, 0, %s36
      %s39 = sadd.s32 1, %s23
      %s40 = scalar_select %p37, %s39, %s23
      %p41 = scmp.ge.s32.totalorder %s40, 2
      %s42 = scalar_select %p41, 0, %s40
      %s43 = ssub.s32 %s23, %s42
      %s44 = ssub.s32 %s25, %s34
      %s45 = sor.u32 %s43, %s44
      %p46 = scmp.eq.s32.totalorder %s45, 0
      %s48 = sadd.s32 %s47, 1
      %s49 = scalar_select %p46, %s47, %s48
      %p52 = pneg %p46
      %p53 = scmp.eq.s32.totalorder %s16, 1
      %p54 = por %p52, %p53
      %p55 = scmp.ne.s32.totalorder %s47, %s50
      %p56 = scmp.eq.s32.totalorder %s16, 0
      %p57 = por %p55, %p56
      %p58 = scmp.ne.s32.totalorder %s47, %s50
      %p59 = scmp.eq.s32.totalorder %s21, 1
      %p60 = por %p58, %p59
      %p61 = scmp.ne.s32.totalorder %s50, %s51
      %p62 = scmp.eq.s32.totalorder %s21, 0
      %p63 = por %p61, %p62
      %p64 = scmp.ne.s32.totalorder %s50, %s51
      %p65 = scmp.eq.s32.totalorder %s22, 1
      %p66 = por %p64, %p65
      %p68 = scmp.ne.s32.totalorder %s51, %s67
      %p69 = scmp.eq.s32.totalorder %s22, 0
      %p70 = por %p68, %p69
      %s71 = ssub.s32 %s25, %s34
      %s72 = ssub.s32 %s24, %s38
      %s73 = sor.u32 %s71, %s72
      %p74 = scmp.eq.s32.totalorder %s73, 0
      %s76 = sadd.s32 %s75, 1
      %s77 = scalar_select %p74, %s75, %s76
      %p80 = pneg %p74
      %p81 = scmp.eq.s32.totalorder %s16, 1
      %p82 = por %p80, %p81
      %p83 = scmp.ne.s32.totalorder %s75, %s78
      %p84 = scmp.eq.s32.totalorder %s16, 0
      %p85 = por %p83, %p84
      %p86 = scmp.ne.s32.totalorder %s75, %s78
      %p87 = scmp.eq.s32.totalorder %s21, 1
      %p88 = por %p86, %p87
      %p89 = scmp.ne.s32.totalorder %s78, %s79
      %p90 = scmp.eq.s32.totalorder %s21, 0
      %p91 = por %p89, %p90
      %p92 = scmp.ne.s32.totalorder %s78, %s79
      %p93 = scmp.eq.s32.totalorder %s22, 1
      %p94 = por %p92, %p93
      %p96 = scmp.ne.s32.totalorder %s79, %s95
      %p97 = scmp.eq.s32.totalorder %s22, 0
      %p98 = por %p96, %p97
      %s99 = ssub.s32 %s24, %s38
      %p100 = scmp.eq.s32.totalorder %s99, 0
      %s102 = sadd.s32 %s101, 1
      %s103 = scalar_select %p100, %s101, %s102
      %p106 = pneg %p100
      %p107 = scmp.eq.s32.totalorder %s16, 1
      %p108 = por %p106, %p107
      %p109 = scmp.ne.s32.totalorder %s101, %s104
      %p110 = scmp.eq.s32.totalorder %s16, 0
      %p111 = por %p109, %p110
      %p112 = scmp.ne.s32.totalorder %s101, %s104
      %p113 = scmp.eq.s32.totalorder %s21, 1
      %p114 = por %p112, %p113
      %p115 = scmp.ne.s32.totalorder %s104, %s105
      %p116 = scmp.eq.s32.totalorder %s21, 0
      %p117 = por %p115, %p116
      %p118 = scmp.ne.s32.totalorder %s104, %s105
      %p119 = scmp.eq.s32.totalorder %s22, 1
      %p120 = por %p118, %p119
      %p122 = scmp.ne.s32.totalorder %s105, %s121
      %p123 = scmp.eq.s32.totalorder %s22, 0
      %p124 = por %p122, %p123
      %s125 = ssub.s32 %s23, %s42
      %s126 = ssub.s32 %s24, %s38
      %s127 = sor.u32 %s125, %s126
      %p128 = scmp.eq.s32.totalorder %s127, 0
      %s130 = sadd.s32 %s129, 1
      %s131 = scalar_select %p128, %s129, %s130
      %p134 = pneg %p128
      %p135 = scmp.eq.s32.totalorder %s16, 1
      %p136 = por %p134, %p135
      %p137 = scmp.ne.s32.totalorder %s129, %s132
      %p138 = scmp.eq.s32.totalorder %s16, 0
      %p139 = por %p137, %p138
      %p140 = scmp.ne.s32.totalorder %s129, %s132
      %p141 = scmp.eq.s32.totalorder %s21, 1
      %p142 = por %p140, %p141
      %p143 = scmp.ne.s32.totalorder %s132, %s133
      %p144 = scmp.eq.s32.totalorder %s21, 0
      %p145 = por %p143, %p144
      %p146 = scmp.ne.s32.totalorder %s132, %s133
      %p147 = scmp.eq.s32.totalorder %s22, 1
      %p148 = por %p146, %p147
      %p150 = scmp.ne.s32.totalorder %s133, %s149
      %p151 = scmp.eq.s32.totalorder %s22, 0
      %p152 = por %p150, %p151
      %p153 = scmp.le.s32.totalorder 1, %s16
      %p154 = scmp.lt.s32.totalorder %s16, 3
      %p155 = pnand %p153, %p154
      %p156 = pneg %p155
      // Predicated region
      $region9: #{tpu_custom_call.1} parent=5 // pred_check
        _
      $region10: #{tpu_custom_call.1} parent=5 // pred_check_branch
        %158 = sbr.rel (%p155) target = $region12
      $region11: #{tpu_custom_call.1} parent=5 // pred_region
        %s159 = ssub.s32 %s16, 1
        // Predicated region
        $region13: #{tpu_custom_call.1} parent=11 // pred_check
          %p160 = pneg %p91
        $region14: #{tpu_custom_call.1} parent=11 // pred_check_branch
          %162 = sbr.rel (%p160) target = $region16
        $region15: #{tpu_custom_call.1} parent=11 // pred_region
          %s163 = smul.u32 16, %s28
          %s165 = ssub.s32 1024, 1024
          %166 = vsyncadd [#allocation7], %s165
          %s167 = sadd.s32 %s27, %s163
          %s168 = smul.addr %s167, 64
          %s169 = scalar_lea.hbm %s1, %s168
          %s170 = sshll.u32 [#allocation6], 4
          %s171 = int_to_ptr.vmem [resolvable:$true] %s170
          %176 = dma.hbm_to_vmem [thread:$0]  %s169, 1024, %s171, [#allocation7], 64, 64, 4
        $region16: #{tpu_custom_call.1} parent=11 // pred_fallthru
          _
        // Predicated region
        $region17: #{tpu_custom_call.1} parent=11 // pred_check
          %p177 = pneg %p117
        $region18: #{tpu_custom_call.1} parent=11 // pred_check_branch
          %179 = sbr.rel (%p177) target = $region20
        $region19: #{tpu_custom_call.1} parent=11 // pred_region
          %p180 = scmp.lt.s32.totalorder %s27, 0
          %s181 = scalar_select %p180, %s27, 0
          %s182 = scalar_lea.vmem %s2, %s181
        $region20: #{tpu_custom_call.1} parent=11 // pred_fallthru
          _
      $region12: #{tpu_custom_call.1} parent=5 // pred_fallthru
        _
      %p183 = scmp.lt.s32.totalorder %s16, 2
      // Predicated region
      $region21: #{tpu_custom_call.1} parent=5 // pred_check
        %p184 = pneg %p183
      $region22: #{tpu_custom_call.1} parent=5 // pred_check_branch
        %186 = sbr.rel (%p184) target = $region24
      $region23: #{tpu_custom_call.1} parent=5 // pred_region
        // Predicated region
        $region25: #{tpu_custom_call.1} parent=23 // pred_check
          %p187 = pneg %p57
        $region26: #{tpu_custom_call.1} parent=23 // pred_check_branch
          %189 = sbr.rel (%p187) target = $region28
        $region27: #{tpu_custom_call.1} parent=23 // pred_region
          %s190 = sand.u32 %s47, 1
          %s191 = scalar_lea.sflag [#allocation4], %s190
          %s192 = sand.u32 %s47, 1
          %s193 = smul.addr %s192, 32
          %s194 = scalar_lea.vmem [#allocation3], %s193
          %s195 = smul.u32 8, %s23
          %s197 = ssub.s32 512, 512
          %198 = vsyncadd %s191, %s197
          %s199 = sadd.s32 %s25, %s195
          %s200 = smul.addr %s199, 64
          %s201 = scalar_lea.hbm %s0, %s200
          %s202 = sshll.u32 %s194, 4
          %s203 = int_to_ptr.vmem [resolvable:$true] %s202
          %208 = dma.hbm_to_vmem [thread:$0]  %s201, 512, %s203, %s191, 64, 64, 4
        $region28: #{tpu_custom_call.1} parent=23 // pred_fallthru
          _
      $region24: #{tpu_custom_call.1} parent=5 // pred_fallthru
        _
      %p209 = scmp.le.s32.totalorder 1, %s16
      %p210 = scmp.lt.s32.totalorder %s16, 3
      %p211 = pnand %p209, %p210
      %p212 = pneg %p211
      // Predicated region
      $region29: #{tpu_custom_call.1} parent=5 // pred_check
        _
      $region30: #{tpu_custom_call.1} parent=5 // pred_check_branch
        %214 = sbr.rel (%p211) target = $region32
      $region31: #{tpu_custom_call.1} parent=5 // pred_region
        %s215 = ssub.s32 %s16, 1
        %s216 = sand.u32 %s50, 1
        %s217 = scalar_lea.sflag [#allocation4], %s216
        %s218 = sand.u32 %s50, 1
        %s219 = smul.addr %s218, 32
        %s220 = scalar_lea.vmem [#allocation3], %s219
        // Predicated region
        $region33: #{tpu_custom_call.1} parent=31 // pred_check
          %p221 = pneg %p63
        $region34: #{tpu_custom_call.1} parent=31 // pred_check_branch
          %223 = sbr.rel (%p221) target = $region36
        $region35: #{tpu_custom_call.1} parent=31 // pred_region
          %224 = dma.done %s217, 512
        $region36: #{tpu_custom_call.1} parent=31 // pred_fallthru
          _
        // Predicated region
        $region37: #{tpu_custom_call.1} parent=31 // pred_check
          %p225 = pneg %p91
        $region38: #{tpu_custom_call.1} parent=31 // pred_check_branch
          %227 = sbr.rel (%p225) target = $region40
        $region39: #{tpu_custom_call.1} parent=31 // pred_region
          %228 = dma.done [#allocation7], 1024
        $region40: #{tpu_custom_call.1} parent=31 // pred_fallthru
          _
        %s229 = sand.u32 %s50, 1
        %s230 = scalar_lea.sflag [#allocation4], %s229
        %s231 = sand.u32 %s50, 1
        %s232 = smul.addr %s231, 32
        %s233 = scalar_lea.vmem [#allocation3], %s232
        %p234 = pneg %p63
        %p235 = pneg %p60
        %p236 = pneg %p91
        %p237 = pneg %p88
        %p238 = scmp.lt.s32.totalorder %s27, 0
        %s239 = scalar_select %p238, %s27, 0
        %s240 = scalar_lea.vmem %s2, %s239
        %p241 = pneg %p117
        %p242 = pneg %p114
        %p243 = pneg %p145
        %p244 = pneg %p142
        %s245 = sand.u32 %s132, 1
        %s246 = scalar_lea.sflag [#allocation5], %s245
        %s247 = sand.u32 %s132, 1
        %s248 = smul.addr %s247, 32
        %s249 = scalar_lea.vmem [#allocation8], %s248
        %s250 = smul.u32 8, %s26
        %s251 = smul.u32 16, %s28
        %p252 = scmp.lt.s32.totalorder %s27, 0
        %s253 = scalar_select %p252, %s27, 0
        %s254 = scalar_lea.vmem %s2, %s253
        %s255 = smul.u32 8, %s26
        %p257 = scmp.eq.s32.totalorder %s28, 0
        // Predicated region
        $region41: #{tpu_custom_call.1} parent=31 // pred_check
          %p258 = pneg %p257
        $region42: #{tpu_custom_call.1} parent=31 // pred_check_branch
          %260 = sbr.rel (%p258) target = $region44
        $region43: #{tpu_custom_call.1} parent=31 // pred_region
          %261 = vst [vmem:[#allocation2] sm:$0xff] 0.0
          %262 = vst [vmem:[#allocation2 + $0x8] sm:$0xff] 0.0
          %263 = vst [vmem:[#allocation2 + $0x10] sm:$0xff] 0.0
          %264 = vst [vmem:[#allocation2 + $0x18] sm:$0xff] 0.0
          %265 = vst [vmem:[#allocation2 + $0x20] sm:$0xff] 0.0
          %266 = vst [vmem:[#allocation2 + $0x28] sm:$0xff] 0.0
          %267 = vst [vmem:[#allocation2 + $0x30] sm:$0xff] 0.0
          %268 = vst [vmem:[#allocation2 + $0x38] sm:$0xff] 0.0
        $region44: #{tpu_custom_call.1} parent=31 // pred_fallthru
          _
        %v269 = vld [vmem:[#allocation2] sm:$0xff]
        %v270 = vld [vmem:[#allocation2 + $0x8] sm:$0xff]
        %v271 = vld [vmem:[#allocation2 + $0x10] sm:$0xff]
        %v272 = vld [vmem:[#allocation2 + $0x18] sm:$0xff]
        %v273 = vld [vmem:[#allocation2 + $0x20] sm:$0xff]
        %v274 = vld [vmem:[#allocation2 + $0x28] sm:$0xff]
        %v275 = vld [vmem:[#allocation2 + $0x30] sm:$0xff]
        %v276 = vld [vmem:[#allocation2 + $0x38] sm:$0xff]
        %v277 = vld [vmem:[%s220] sm:$0xf]
        %v278 = vld [vmem:[%s220 + $0x4] sm:$0xf]
        %v279 = vld [vmem:[%s220 + $0x8] sm:$0xf]
        %v280 = vld [vmem:[%s220 + $0xc] sm:$0xf]
        %v281 = vld [vmem:[%s220 + $0x10] sm:$0xf]
        %v282 = vld [vmem:[%s220 + $0x14] sm:$0xf]
        %v283 = vld [vmem:[%s220 + $0x18] sm:$0xf]
        %v284 = vld [vmem:[%s220 + $0x1c] sm:$0xf]
        %v285 = vld [vmem:[#allocation6] sm:$0xf]
        %v286 = vld [vmem:[#allocation6 + $0x4] sm:$0xf]
        %v287 = vld [vmem:[#allocation6 + $0x8] sm:$0xf]
        %v288 = vld [vmem:[#allocation6 + $0xc] sm:$0xf]
        %v289 = vld [vmem:[#allocation6 + $0x10] sm:$0xf]
        %v290 = vld [vmem:[#allocation6 + $0x14] sm:$0xf]
        %v291 = vld [vmem:[#allocation6 + $0x18] sm:$0xf]
        %v292 = vld [vmem:[#allocation6 + $0x1c] sm:$0xf]
        %v293 = vld [vmem:[#allocation6 + $0x20] sm:$0xf]
        %v294 = vld [vmem:[#allocation6 + $0x24] sm:$0xf]
        %v295 = vld [vmem:[#allocation6 + $0x28] sm:$0xf]
        %v296 = vld [vmem:[#allocation6 + $0x2c] sm:$0xf]
        %v297 = vld [vmem:[#allocation6 + $0x30] sm:$0xf]
        %v298 = vld [vmem:[#allocation6 + $0x34] sm:$0xf]
        %v299 = vld [vmem:[#allocation6 + $0x38] sm:$0xf]
        %v300 = vld [vmem:[#allocation6 + $0x3c] sm:$0xf]
        %v309 = vunpack.c.l.b16 %v277
        %v310 = vunpack.c.l.b16 %v278
        %v311 = vunpack.c.l.b16 %v279
        %v312 = vunpack.c.l.b16 %v280
        %v313 = vunpack.c.l.b16 %v281
        %v314 = vunpack.c.l.b16 %v282
        %v315 = vunpack.c.l.b16 %v283
        %v316 = vunpack.c.l.b16 %v284
        %v317 = vpack.c.b16 %v310, %v309
        %v318 = vpack.c.b16 %v312, %v311
        %v319 = vpack.c.b16 %v314, %v313
        %v320 = vpack.c.b16 %v316, %v315
        %v341 = vunpack.c.l.b16 %v285
        %v342 = vunpack.c.l.b16 %v286
        %v343 = vunpack.c.l.b16 %v287
        %v344 = vunpack.c.l.b16 %v288
        %v345 = vunpack.c.l.b16 %v289
        %v346 = vunpack.c.l.b16 %v290
        %v347 = vunpack.c.l.b16 %v291
        %v348 = vunpack.c.l.b16 %v292
        %v349 = vunpack.c.l.b16 %v293
        %v350 = vunpack.c.l.b16 %v294
        %v351 = vunpack.c.l.b16 %v295
        %v352 = vunpack.c.l.b16 %v296
        %v353 = vunpack.c.l.b16 %v297
        %v354 = vunpack.c.l.b16 %v298
        %v355 = vunpack.c.l.b16 %v299
        %v356 = vunpack.c.l.b16 %v300
        %v357 = vpack.c.b16 %v342, %v341
        %v358 = vpack.c.b16 %v344, %v343
        %v359 = vpack.c.b16 %v346, %v345
        %v360 = vpack.c.b16 %v348, %v347
        %v361 = vpack.c.b16 %v350, %v349
        %v362 = vpack.c.b16 %v352, %v351
        %v363 = vpack.c.b16 %v354, %v353
        %v364 = vpack.c.b16 %v356, %v355
        %373 = vmatprep.subr.bf16.mxu0 0
        %374 = vmatpush1.bf16.msra.mxu0 %v357
        %375 = vmatprep.subr.bf16.mxu0 0
        %376 = vmatpush1.bf16.msra.mxu0 %v358
        %377 = vmatprep.subr.bf16.mxu0 0
        %378 = vmatpush1.bf16.msra.mxu0 %v359
        %379 = vmatprep.subr.bf16.mxu0 0
        %380 = vmatpush1.bf16.msra.mxu0 %v360
        %381 = vmatprep.subr.bf16.mxu0 0
        %382 = vmatpush1.bf16.msra.mxu0 %v361
        %383 = vmatprep.subr.bf16.mxu0 0
        %384 = vmatpush1.bf16.msra.mxu0 %v362
        %385 = vmatprep.subr.bf16.mxu0 0
        %386 = vmatpush1.bf16.msra.mxu0 %v363
        %387 = vmatprep.subr.bf16.mxu0 0
        %388 = vmatpush1.bf16.msra.mxu0 %v364
        %389 = vmatprep.subr.bf16.mxu0 0
        %390 = vmatpush1.bf16.msra.mxu0 0
        %391 = vmatprep.subr.bf16.mxu0 0
        %392 = vmatpush1.bf16.msra.mxu0 0
        %393 = vmatprep.subr.bf16.mxu0 0
        %394 = vmatpush1.bf16.msra.mxu0 0
        %395 = vmatprep.subr.bf16.mxu0 0
        %396 = vmatpush1.bf16.msra.mxu0 0
        %397 = vmatprep.subr.bf16.mxu0 0
        %398 = vmatpush1.bf16.msra.mxu0 0
        %399 = vmatprep.subr.bf16.mxu0 0
        %400 = vmatpush1.bf16.msra.mxu0 0
        %401 = vmatprep.subr.bf16.mxu0 0
        %402 = vmatpush1.bf16.msra.mxu0 0
        %403 = vmatprep.subr.bf16.mxu0 0
        %404 = vmatpush1.bf16.msra.mxu0 0
        %405 = vmatprep.mubr.bf16.mxu0 0
        %406 = vmatmul.mubr.bf16.gmra.mrb[0].mxu0 %v317
        %v407 = vpop.f32.mrb[0].mxu0
        %v408 = vadd.f32 0.0, %v407
        %v409 = vpop.f32.mrb[0].mxu0
        %v410 = vpop.f32.mrb[0].mxu0
        %v411 = vadd.f32 0.0, %v410
        %v412 = vpop.f32.mrb[0].mxu0
        %413 = vmatprep.mubr.bf16.mxu0 0
        %414 = vmatmul.mubr.bf16.gmra.mrb[0].mxu0 %v318
        %v415 = vpop.f32.mrb[0].mxu0
        %v416 = vadd.f32 0.0, %v415
        %v417 = vpop.f32.mrb[0].mxu0
        %v418 = vpop.f32.mrb[0].mxu0
        %v419 = vadd.f32 0.0, %v418
        %v420 = vpop.f32.mrb[0].mxu0
        %421 = vmatprep.mubr.bf16.mxu0 0
        %422 = vmatmul.mubr.bf16.gmra.mrb[0].mxu0 %v319
        %v423 = vpop.f32.mrb[0].mxu0
        %v424 = vadd.f32 0.0, %v423
        %v425 = vpop.f32.mrb[0].mxu0
        %v426 = vpop.f32.mrb[0].mxu0
        %v427 = vadd.f32 0.0, %v426
        %v428 = vpop.f32.mrb[0].mxu0
        %429 = vmatprep.mubr.bf16.mxu0 0
        %430 = vmatmul.mubr.bf16.gmra.mrb[0].mxu0 %v320
        %v431 = vpop.f32.mrb[0].mxu0
        %v432 = vadd.f32 0.0, %v431
        %v433 = vpop.f32.mrb[0].mxu0
        %v434 = vpop.f32.mrb[0].mxu0
        %v435 = vadd.f32 0.0, %v434
        %v436 = vpop.f32.mrb[0].mxu0
        %437 = vdwg.mxu0
        %v438 = vadd.f32 %v269, %v408
        %v439 = vadd.f32 %v270, %v411
        %v440 = vadd.f32 %v271, %v416
        %v441 = vadd.f32 %v272, %v419
        %v442 = vadd.f32 %v273, %v424
        %v443 = vadd.f32 %v274, %v427
        %v444 = vadd.f32 %v275, %v432
        %v445 = vadd.f32 %v276, %v435
        %446 = vst [vmem:[#allocation2] sm:$0xff] %v438
        %447 = vst [vmem:[#allocation2 + $0x8] sm:$0xff] %v439
        %448 = vst [vmem:[#allocation2 + $0x10] sm:$0xff] %v440
        %449 = vst [vmem:[#allocation2 + $0x18] sm:$0xff] %v441
        %450 = vst [vmem:[#allocation2 + $0x20] sm:$0xff] %v442
        %451 = vst [vmem:[#allocation2 + $0x28] sm:$0xff] %v443
        %452 = vst [vmem:[#allocation2 + $0x30] sm:$0xff] %v444
        %453 = vst [vmem:[#allocation2 + $0x38] sm:$0xff] %v445
        // Predicated region
        $region45: #{tpu_custom_call.1} parent=31 // pred_check
          %p454 = pneg %p257
        $region46: #{tpu_custom_call.1} parent=31 // pred_check_branch
          %456 = sbr.rel (%p454) target = $region48
        $region47: #{tpu_custom_call.1} parent=31 // pred_region
          %v457 = vld [vmem:[#allocation2] sm:$0xff]
          %v458 = vld [vmem:[#allocation2 + $0x8] sm:$0xff]
          %v459 = vld [vmem:[#allocation2 + $0x10] sm:$0xff]
          %v460 = vld [vmem:[#allocation2 + $0x18] sm:$0xff]
          %v461 = vld [vmem:[#allocation2 + $0x20] sm:$0xff]
          %v462 = vld [vmem:[#allocation2 + $0x28] sm:$0xff]
          %v463 = vld [vmem:[#allocation2 + $0x30] sm:$0xff]
          %v464 = vld [vmem:[#allocation2 + $0x38] sm:$0xff]
          %v465 = vld [vmem:[%s254] sm:$0x1]
          %v467 = vlaneseq
          %v468 = vshrl.u32 %v467, 7
          %v469 = vsub.s32 0, %v468
          %v470 = vrot.slane %v465, %v469
          %v472 = vadd.f32 %v457, %v470
          %v473 = vadd.f32 %v458, %v470
          %v474 = vadd.f32 %v459, %v470
          %v475 = vadd.f32 %v460, %v470
          %v476 = vadd.f32 %v461, %v470
          %v477 = vadd.f32 %v462, %v470
          %v478 = vadd.f32 %v463, %v470
          %v479 = vadd.f32 %v464, %v470
          %v480 = vmax.f32 %v472, 0.0
          %v481 = vmax.f32 %v473, 0.0
          %v482 = vmax.f32 %v474, 0.0
          %v483 = vmax.f32 %v475, 0.0
          %v484 = vmax.f32 %v476, 0.0
          %v485 = vmax.f32 %v477, 0.0
          %v486 = vmax.f32 %v478, 0.0
          %v487 = vmax.f32 %v479, 0.0
          %v488 = vpack.c.bf16 %v481, %v480
          %v489 = vpack.c.bf16 %v483, %v482
          %v490 = vpack.c.bf16 %v485, %v484
          %v491 = vpack.c.bf16 %v487, %v486
          %v496 = vunpack.c.l.b16 %v488
          %v497 = vunpack.c.h.b16 %v488
          %v498 = vunpack.c.l.b16 %v489
          %v499 = vunpack.c.h.b16 %v489
          %v500 = vunpack.c.l.b16 %v490
          %v501 = vunpack.c.h.b16 %v490
          %v502 = vunpack.c.l.b16 %v491
          %v503 = vunpack.c.h.b16 %v491
          %v504 = vpack.c.b16 %v496, %v496
          %v505 = vpack.c.b16 %v497, %v497
          %v506 = vpack.c.b16 %v498, %v498
          %v507 = vpack.c.b16 %v499, %v499
          %v508 = vpack.c.b16 %v500, %v500
          %v509 = vpack.c.b16 %v501, %v501
          %v510 = vpack.c.b16 %v502, %v502
          %v511 = vpack.c.b16 %v503, %v503
          %520 = vst [vmem:[%s249] sm:$0xf] %v504
          %521 = vst [vmem:[%s249 + $0x4] sm:$0xf] %v505
          %522 = vst [vmem:[%s249 + $0x8] sm:$0xf] %v506
          %523 = vst [vmem:[%s249 + $0xc] sm:$0xf] %v507
          %524 = vst [vmem:[%s249 + $0x10] sm:$0xf] %v508
          %525 = vst [vmem:[%s249 + $0x14] sm:$0xf] %v509
          %526 = vst [vmem:[%s249 + $0x18] sm:$0xf] %v510
          %527 = vst [vmem:[%s249 + $0x1c] sm:$0xf] %v511
        $region48: #{tpu_custom_call.1} parent=31 // pred_fallthru
          _
        %s528 = sand.u32 %s132, 1
        %s529 = scalar_lea.sflag [#allocation5], %s528
        %s530 = sand.u32 %s132, 1
        %s531 = smul.addr %s530, 32
        %s532 = scalar_lea.vmem [#allocation8], %s531
        // Predicated region
        $region49: #{tpu_custom_call.1} parent=31 // pred_check
          %p533 = pneg %p142
        $region50: #{tpu_custom_call.1} parent=31 // pred_check_branch
          %535 = sbr.rel (%p533) target = $region52
        $region51: #{tpu_custom_call.1} parent=31 // pred_region
          %s536 = smul.u32 8, %s26
          %s538 = ssub.s32 512, 512
          %539 = vsyncadd %s529, %s538
          %s540 = sadd.s32 %s27, %s536
          %s541 = smul.addr %s540, 64
          %s542 = scalar_lea.hbm %s3, %s541
          %s543 = sshll.u32 %s532, 4
          %s544 = int_to_ptr.vmem [resolvable:$true] %s543
          %549 = dma.vmem_to_hbm [thread:$0]  %s544, 512, %s542, %s529, 64, 64, 4
        $region52: #{tpu_custom_call.1} parent=31 // pred_fallthru
          _
      $region32: #{tpu_custom_call.1} parent=5 // pred_fallthru
        _
      %p550 = scmp.le.s32.totalorder 2, %s16
      // Predicated region
      $region53: #{tpu_custom_call.1} parent=5 // pred_check
        %p551 = pneg %p550
      $region54: #{tpu_custom_call.1} parent=5 // pred_check_branch
        %553 = sbr.rel (%p551) target = $region56
      $region55: #{tpu_custom_call.1} parent=5 // pred_region
        %s554 = ssub.s32 %s16, 2
        // Predicated region
        $region57: #{tpu_custom_call.1} parent=55 // pred_check
          %p555 = pneg %p148
        $region58: #{tpu_custom_call.1} parent=55 // pred_check_branch
          %557 = sbr.rel (%p555) target = $region60
        $region59: #{tpu_custom_call.1} parent=55 // pred_region
          %s558 = sand.u32 %s133, 1
          %s559 = scalar_lea.sflag [#allocation5], %s558
          %s560 = sand.u32 %s133, 1
          %s561 = smul.addr %s560, 32
          %s562 = scalar_lea.vmem [#allocation8], %s561
          %563 = dma.done %s559, 512
        $region60: #{tpu_custom_call.1} parent=55 // pred_fallthru
          _
      $region56: #{tpu_custom_call.1} parent=5 // pred_fallthru
        _
    $region6: #{tpu_custom_call.1} parent=1 // loop_footer
      %s20 = sadd.s32 1, %s16
    $region7: #{tpu_custom_call.1} parent=1 // loop_footer_branch
      %15 = sbr.rel target = $region3
    $region8: #{tpu_custom_call.1} parent=1 // loop_exit
      _
    %564 = vsyncpa [#allocation4], 1
    %s565 = scalar_lea.sflag [#allocation4], 1
    %566 = vsyncpa %s565, 1
    %567 = vsyncpa [#allocation7], 1
    %568 = vsyncpa [#allocation5], 1
    %s569 = scalar_lea.sflag [#allocation5], 1
    %570 = vsyncpa %s569, 1

</llo_original>
